<compile_context>
chip_gen: v7x
topology: tpu7x:2x2x1
jax: 0.10.0
libtpu: 0.0.40
codegen_flags: <defaults>
</compile_context>

<pallas_src>
import functools
import math

import jax
import jax.numpy as jnp
from jax import lax
from jax.experimental import pallas as pl
from jax.experimental.pallas import tpu as pltpu

_LANES = 128
_SUBLANES = 8
# Max elements of one input block: 512K f32 = 2 MiB per input per grid step.
_MAX_TILE_ELEMS = 512 * 1024
_LN2 = math.log(2.0)


def _round_up(x, m):
    return ((x + m - 1) // m) * m


def _bce_tile_kernel(y_ref, d_ref, part_ref, *, mask_rows, valid_rows, tm):
    """One grid step: stable BCE-with-sigmoid over the tile -> lane-wise partial sums."""
    y = y_ref[...].astype(jnp.float32)
    d = d_ref[...].astype(jnp.float32)
    # -(d*log(sigmoid(y)) + (1-d)*log(1-sigmoid(y)))  ==  max(y,0) - y*d + log(1+exp(-|y|))
    # 2 transcendentals/elem; finite for all y (unlike the naive 3-transcendental form).
    # (log instead of log1p is exact enough here: the argument is always in (1, 2].)
    loss = jnp.maximum(y, 0.0) - y * d + jnp.log(1.0 + jnp.exp(-jnp.abs(y)))
    if mask_rows:
        # Compiled in only when the last tile hangs past the array: those rows hold
        # unspecified boundary data and must be zeroed before the reduce.
        row = lax.broadcasted_iota(jnp.int32, loss.shape, 0)
        loss = jnp.where(pl.program_id(0) * tm + row < valid_rows, loss, 0.0)
    # Keep a lane-wise vector partial (cross-sublane reduce only); the single
    # cross-lane reduce + mean happen once in the tiny jnp epilogue.
    part_ref[0] = jnp.sum(loss, axis=0, keepdims=True)


def bce_loss(y, d):
    """Pallas equivalent of BCELoss.forward(y, d): mean of -(d*log(sigmoid(y)) + (1-d)*log(1-sigmoid(y)))."""
    assert y.shape == d.shape, (y.shape, d.shape)
    total = y.size
    if total == 0:
        return jnp.asarray(jnp.nan, jnp.float32)   # torch: mean() over empty -> nan

    if y.ndim >= 2:
        c = y.shape[-1]
        r = total // c
    else:
        r, c = 1, total

    # ---- choose a lane-friendly 2-D view; copy-free whenever possible -------
    pad = 0
    if c % _LANES == 0 and c <= _MAX_TILE_ELEMS // _SUBLANES:
        vr, vc = r, c                                    # native last dim already lane-aligned
        y2, d2 = y.reshape(vr, vc), d.reshape(vr, vc)    # free reshape (no copy)
    elif total % _LANES == 0:
        vr, vc = total // _LANES, _LANES                 # flat lane-dense view
        y2, d2 = y.reshape(vr, vc), d.reshape(vr, vc)    # free reshape (no copy)
    elif _round_up(r, _SUBLANES) * _round_up(c, _LANES) <= _MAX_TILE_ELEMS:
        vr, vc = r, c                                    # small: one full-dims block
        y2, d2 = y.reshape(vr, vc), d.reshape(vr, vc)    # (exempt from the (8,128) rule)
    else:
        # Large & lane-unfriendly: pad the flat view to ONE 128-lane boundary only.
        # Each zero-padded element contributes exactly log 2 (subtracted below).
        pad = (-total) % _LANES
        vr, vc = (total + pad) // _LANES, _LANES
        y2 = jnp.pad(y.reshape(-1), (0, pad)).reshape(vr, vc)
        d2 = jnp.pad(d.reshape(-1), (0, pad)).reshape(vr, vc)

    # ---- pick the row tile: as big as safely fits VMEM, divisor preferred ----
    c_eff = _round_up(vc, _LANES)
    max_rows = max(_SUBLANES, ((_MAX_TILE_ELEMS // c_eff) // _SUBLANES) * _SUBLANES)
    if vr <= max_rows:
        tm = vr                        # single block; full-dims block is (8,128)-exempt
    else:
        tm = max_rows
        for cand in range(max_rows, max(max_rows // 2, _SUBLANES) - 1, -_SUBLANES):
            if vr % cand == 0:         # a dividing tile -> tail mask compiled out
                tm = cand
                break
    grid_n = (vr + tm - 1) // tm
    mask_rows = (vr % tm) != 0

    partials = pl.pallas_call(
        functools.partial(_bce_tile_kernel, mask_rows=mask_rows, valid_rows=vr, tm=tm),
        out_shape=jax.ShapeDtypeStruct((grid_n, 1, vc), jnp.float32),
        grid=(grid_n,),
        in_specs=[
            pl.BlockSpec((tm, vc), lambda i: (i, 0)),
            pl.BlockSpec((tm, vc), lambda i: (i, 0)),
        ],
        out_specs=pl.BlockSpec((1, 1, vc), lambda i: (i, 0, 0)),
        compiler_params=pltpu.CompilerParams(
            # Independent per-tile partials: lets v7x split the grid across both TCs.
            dimension_semantics=("parallel",)),
    )(y2, d2)

    loss_sum = jnp.sum(partials, dtype=jnp.float32)
    if pad:
        loss_sum = loss_sum - jnp.float32(pad * _LN2)
    return loss_sum / jnp.float32(total)


if __name__ == "__main__":
    def ref_bce(yy, dd):
        # Exact PyTorch-module formula (naive form) as the reference.
        p = jax.nn.sigmoid(yy.astype(jnp.float32))
        dd = dd.astype(jnp.float32)
        return jnp.mean(-(dd * jnp.log(p) + (1.0 - dd) * jnp.log(1.0 - p)))

    key = jax.random.PRNGKey(0)
    ky, kd = jax.random.split(key)

    # Shapes matching the ACGAN usage of this loss: GAN-head logits [B, 1]
    # and real/fake targets in {0, 1}.
    B = 64
    y = jax.random.normal(ky, (B, 1), jnp.float32)
    d = jax.random.bernoulli(kd, 0.5, (B, 1)).astype(jnp.float32)

    loss = bce_loss(y, d)
    jax.block_until_ready(loss)

    ref = ref_bce(y, d)
    assert loss.shape == () and loss.dtype == jnp.float32
    assert bool(jnp.isfinite(loss))
    assert abs(float(loss) - float(ref)) < 1e-5, (float(loss), float(ref))

    # Exercise the other (still copy-free) layout branches on small odd shapes.
    for i, shape in enumerate([(2, 4, 16, 16), (7, 13)]):
        k1, k2 = jax.random.split(jax.random.PRNGKey(i + 1))
        yy = jax.random.normal(k1, shape, jnp.float32)
        dd = jax.random.bernoulli(k2, 0.5, shape).astype(jnp.float32)
        got = bce_loss(yy, dd)
        jax.block_until_ready(got)
        want = ref_bce(yy, dd)
        assert abs(float(got) - float(want)) < 1e-5, (shape, float(got), float(want))

    print("KERNEL_OK")
</pallas_src>

<mosaic_0001>
module attributes {stable_mosaic.version = 11 : i64} {
  func.func @_bce_tile_kernel(%arg0: i32, %arg1: memref<64x1xf32, #tpu.memory_space<vmem>>, %arg2: memref<64x1xf32, #tpu.memory_space<vmem>>, %arg3: memref<1x1x1xf32, #tpu.memory_space<vmem>>) attributes {dimension_semantics = [#tpu.dimension_semantics<parallel>], iteration_bounds = array<i64: 1>, scalar_prefetch = 0 : i64, scratch_operands = 0 : i64, tpu.core_type = #tpu.core_type<tc>, window_params = [{transform_indices = @transform_0, window_bounds = array<i64: 64, 1>}, {transform_indices = @transform_1, window_bounds = array<i64: 64, 1>}, {transform_indices = @transform_2, window_bounds = array<i64: 1, 1, 1>}]} {
    %c0 = arith.constant 0 : index
    %c0_0 = arith.constant 0 : index
    %0 = vector.load %arg1[%c0, %c0_0] : memref<64x1xf32, #tpu.memory_space<vmem>>, vector<64x1xf32>
    %c0_1 = arith.constant 0 : index
    %c0_2 = arith.constant 0 : index
    %1 = vector.load %arg2[%c0_1, %c0_2] : memref<64x1xf32, #tpu.memory_space<vmem>>, vector<64x1xf32>
    %cst = arith.constant 0.000000e+00 : f32
    %2 = vector.broadcast %cst : f32 to vector<64x1xf32>
    %3 = arith.maximumf %0, %2 : vector<64x1xf32>
    %4 = arith.mulf %0, %1 : vector<64x1xf32>
    %5 = arith.subf %3, %4 : vector<64x1xf32>
    %6 = math.absf %0 : vector<64x1xf32>
    %cst_3 = arith.constant 0.000000e+00 : f32
    %7 = vector.broadcast %cst_3 : f32 to vector<64x1xf32>
    %8 = arith.subf %7, %6 : vector<64x1xf32>
    %9 = math.exp %8 : vector<64x1xf32>
    %cst_4 = arith.constant 1.000000e+00 : f32
    %10 = vector.broadcast %cst_4 : f32 to vector<64x1xf32>
    %11 = arith.addf %10, %9 : vector<64x1xf32>
    %12 = math.log %11 : vector<64x1xf32>
    %13 = arith.addf %5, %12 : vector<64x1xf32>
    %cst_5 = arith.constant dense<0.000000e+00> : vector<1xf32>
    %14 = vector.multi_reduction <add>, %13, %cst_5 [0] : vector<64x1xf32> to vector<1xf32>
    %15 = vector.shape_cast %14 : vector<1xf32> to vector<1x1xf32>
    %c0_6 = arith.constant 0 : index
    %c0_7 = arith.constant 0 : index
    %c0_8 = arith.constant 0 : index
    %16 = vector.load %arg3[%c0_6, %c0_7, %c0_8] : memref<1x1x1xf32, #tpu.memory_space<vmem>>, vector<1x1x1xf32>
    %17 = vector.shape_cast %16 : vector<1x1x1xf32> to vector<1x1xf32>
    %18 = vector.shape_cast %15 : vector<1x1xf32> to vector<1x1x1xf32>
    tpu.vector_store %arg3[%c0_6, %c0_7, %c0_8], %18 {strides = array<i32>} : memref<1x1x1xf32, #tpu.memory_space<vmem>>, vector<1x1x1xf32>,
    return
  }
  func.func @transform_0(%arg0: i32) -> (i32, i32) {
    %c0_i32 = arith.constant 0 : i32
    %c0_i32_0 = arith.constant 0 : i32
    return %arg0, %c0_i32 : i32, i32
  }
  func.func @transform_1(%arg0: i32) -> (i32, i32) {
    %c0_i32 = arith.constant 0 : i32
    %c0_i32_0 = arith.constant 0 : i32
    return %arg0, %c0_i32 : i32, i32
  }
  func.func @transform_2(%arg0: i32) -> (i32, i32, i32) {
    %c0_i32 = arith.constant 0 : i32
    %c0_i32_0 = arith.constant 0 : i32
    %c0_i32_1 = arith.constant 0 : i32
    return %arg0, %c0_i32, %c0_i32_0 : i32, i32, i32
  }
}

</mosaic_0001>

<llo_original>
// kernel: tpu_custom_call.1
$region0: #{tpu_custom_call.1}
  #allocation0 [shape = 'u32[]', space=smem, size = 0x4, offset = 0x4, fixed_abs, tag = 'smem constant byte address 0x4 - core index']
  #allocation1 [shape = 'u32[144,128]{1,0:T(1,128)}', space=vmem, size = 0x12000, scoped, tag = 'internal scratch']
  %s0 = inlined_call_operand.vmem [shape: f32[64,1], index: 0, kind: input, shape index: {}]
  %s1 = inlined_call_operand.vmem [shape: f32[64,1], index: 1, kind: input, shape index: {}]
  %s2 = inlined_call_operand.hbm [shape: f32[1,1,1], index: 2, kind: output, shape index: {}]
  %s3 = sld [smem:[#allocation0]]
  $region18: #{tpu_custom_call.1} parent=0
    _
  %s5 = ssub.s32 1, %s3
  %s6 = scalar_select 0, %s5, %s3
  $region1: #{tpu_custom_call.1} parent=0
    #allocation2 [shape = 'u8[512]{0}', space=vmem, size = 0x400, scoped, tag = 'output window, operand 0, single buffered']
    #allocation3 [shape = 's32[1]{0}', space=sflag, size = 0x4, scoped, tag = 'scoped memory for tpu_custom_call.1']
    %7 = vsyncpa [#allocation3], 0
    // Predicated region
    $region2: #{tpu_custom_call.1} parent=1 // pred_check
      _
    $region3: #{tpu_custom_call.1} parent=1 // pred_check_branch
      %9 = sbr.rel (0) target = $region5
    $region4: #{tpu_custom_call.1} parent=1 // pred_region
      _
    $region5: #{tpu_custom_call.1} parent=1 // pred_fallthru
      _
    // Predicated region
    $region6: #{tpu_custom_call.1} parent=1 // pred_check
      _
    $region7: #{tpu_custom_call.1} parent=1 // pred_check_branch
      %11 = sbr.rel (0) target = $region9
    $region8: #{tpu_custom_call.1} parent=1 // pred_region
      _
    $region9: #{tpu_custom_call.1} parent=1 // pred_fallthru
      _
    %v12 = vld [vmem:[%s0] sm:$0xff]
    %v13 = vld [vmem:[%s0 + $0x8] sm:$0xff]
    %v14 = vld [vmem:[%s0 + $0x10] sm:$0xff]
    %v15 = vld [vmem:[%s0 + $0x18] sm:$0xff]
    %v16 = vld [vmem:[%s0 + $0x20] sm:$0xff]
    %v17 = vld [vmem:[%s0 + $0x28] sm:$0xff]
    %v18 = vld [vmem:[%s0 + $0x30] sm:$0xff]
    %v19 = vld [vmem:[%s0 + $0x38] sm:$0xff]
    %v20 = vld [vmem:[%s1] sm:$0xff]
    %v21 = vld [vmem:[%s1 + $0x8] sm:$0xff]
    %v22 = vld [vmem:[%s1 + $0x10] sm:$0xff]
    %v23 = vld [vmem:[%s1 + $0x18] sm:$0xff]
    %v24 = vld [vmem:[%s1 + $0x20] sm:$0xff]
    %v25 = vld [vmem:[%s1 + $0x28] sm:$0xff]
    %v26 = vld [vmem:[%s1 + $0x30] sm:$0xff]
    %v27 = vld [vmem:[%s1 + $0x38] sm:$0xff]
    %v28 = vmax.f32 %v12, 0.0
    %v29 = vmax.f32 %v13, 0.0
    %v30 = vmax.f32 %v14, 0.0
    %v31 = vmax.f32 %v15, 0.0
    %v32 = vmax.f32 %v16, 0.0
    %v33 = vmax.f32 %v17, 0.0
    %v34 = vmax.f32 %v18, 0.0
    %v35 = vmax.f32 %v19, 0.0
    %v36 = vmul.f32 %v12, %v20
    %v37 = vmul.f32 %v13, %v21
    %v38 = vmul.f32 %v14, %v22
    %v39 = vmul.f32 %v15, %v23
    %v40 = vmul.f32 %v16, %v24
    %v41 = vmul.f32 %v17, %v25
    %v42 = vmul.f32 %v18, %v26
    %v43 = vmul.f32 %v19, %v27
    %v44 = vsub.f32 %v28, %v36
    %v45 = vsub.f32 %v29, %v37
    %v46 = vsub.f32 %v30, %v38
    %v47 = vsub.f32 %v31, %v39
    %v48 = vsub.f32 %v32, %v40
    %v49 = vsub.f32 %v33, %v41
    %v50 = vsub.f32 %v34, %v42
    %v51 = vsub.f32 %v35, %v43
    %v52 = vand.u32 2147483647, %v12
    %v53 = vand.u32 2147483647, %v13
    %v54 = vand.u32 2147483647, %v14
    %v55 = vand.u32 2147483647, %v15
    %v56 = vand.u32 2147483647, %v16
    %v57 = vand.u32 2147483647, %v17
    %v58 = vand.u32 2147483647, %v18
    %v59 = vand.u32 2147483647, %v19
    %v60 = vsub.f32 0.0, %v52
    %v61 = vsub.f32 0.0, %v53
    %v62 = vsub.f32 0.0, %v54
    %v63 = vsub.f32 0.0, %v55
    %v64 = vsub.f32 0.0, %v56
    %v65 = vsub.f32 0.0, %v57
    %v66 = vsub.f32 0.0, %v58
    %v67 = vsub.f32 0.0, %v59
    %v68 = vmul.f32 %v60, 1.442695
    %v69 = vpow.pop %v68
    %v70 = vmul.f32 %v61, 1.442695
    %v71 = vpow.pop %v70
    %v72 = vmul.f32 %v62, 1.442695
    %v73 = vpow.pop %v72
    %v74 = vmul.f32 %v63, 1.442695
    %v75 = vpow.pop %v74
    %v76 = vmul.f32 %v64, 1.442695
    %v77 = vpow.pop %v76
    %v78 = vmul.f32 %v65, 1.442695
    %v79 = vpow.pop %v78
    %v80 = vmul.f32 %v66, 1.442695
    %v81 = vpow.pop %v80
    %v82 = vmul.f32 %v67, 1.442695
    %v83 = vpow.pop %v82
    %v84 = vadd.f32 %v69, 1.0
    %v85 = vadd.f32 %v71, 1.0
    %v86 = vadd.f32 %v73, 1.0
    %v87 = vadd.f32 %v75, 1.0
    %v88 = vadd.f32 %v77, 1.0
    %v89 = vadd.f32 %v79, 1.0
    %v90 = vadd.f32 %v81, 1.0
    %v91 = vadd.f32 %v83, 1.0
    %v92 = vlog2.pop %v84
    %v93 = vmul.f32 %v92, 0.6931472
    %v94 = vlog2.pop %v85
    %v95 = vmul.f32 %v94, 0.6931472
    %v96 = vlog2.pop %v86
    %v97 = vmul.f32 %v96, 0.6931472
    %v98 = vlog2.pop %v87
    %v99 = vmul.f32 %v98, 0.6931472
    %v100 = vlog2.pop %v88
    %v101 = vmul.f32 %v100, 0.6931472
    %v102 = vlog2.pop %v89
    %v103 = vmul.f32 %v102, 0.6931472
    %v104 = vlog2.pop %v90
    %v105 = vmul.f32 %v104, 0.6931472
    %v106 = vlog2.pop %v91
    %v107 = vmul.f32 %v106, 0.6931472
    %v108 = vadd.f32 %v44, %v93
    %v109 = vadd.f32 %v45, %v95
    %v110 = vadd.f32 %v46, %v97
    %v111 = vadd.f32 %v47, %v99
    %v112 = vadd.f32 %v48, %v101
    %v113 = vadd.f32 %v49, %v103
    %v114 = vadd.f32 %v50, %v105
    %v115 = vadd.f32 %v51, %v107
    %vm116 = vcmask 7168
    %v117 = vsel %vm116, %v108, 0.0
    %v118 = vsel %vm116, %v109, 0.0
    %v119 = vadd.f32 %v117, %v118
    %v120 = vsel %vm116, %v110, 0.0
    %v121 = vadd.f32 %v119, %v120
    %v122 = vsel %vm116, %v111, 0.0
    %v123 = vadd.f32 %v121, %v122
    %v124 = vsel %vm116, %v112, 0.0
    %v125 = vadd.f32 %v123, %v124
    %v126 = vsel %vm116, %v113, 0.0
    %v127 = vadd.f32 %v125, %v126
    %v128 = vsel %vm116, %v114, 0.0
    %v129 = vadd.f32 %v127, %v128
    %v130 = vsel %vm116, %v115, 0.0
    %v131 = vadd.f32 %v129, %v130
    %v132 = vrot.slane %v131, 4
    %v133 = vadd.f32 %v131, %v132
    %v134 = vrot.slane %v133, 2
    %v135 = vadd.f32 %v133, %v134
    %v136 = vrot.slane %v135, 1
    %v137 = vadd.f32 %v135, %v136
    %vm138 = vcmask 0
    %139 = vst.msk [vmem:[#allocation2] sm:$0x1] %vm138, %v137
    // Predicated region
    $region10: #{tpu_custom_call.1} parent=1 // pred_check
      _
    $region11: #{tpu_custom_call.1} parent=1 // pred_check_branch
      %141 = sbr.rel (0) target = $region13
    $region12: #{tpu_custom_call.1} parent=1 // pred_region
      %s143 = ssub.s32 16, 16
      %144 = vsyncadd [#allocation3], %s143
      %s146 = sshll.u32 [#allocation2], 4
      %s147 = int_to_ptr.vmem [resolvable:$true] %s146
      %149 = dma.vmem_to_hbm [thread:$0]  %s147, 16, %s2, [#allocation3]
    $region13: #{tpu_custom_call.1} parent=1 // pred_fallthru
      _
    // Predicated region
    $region14: #{tpu_custom_call.1} parent=1 // pred_check
      _
    $region15: #{tpu_custom_call.1} parent=1 // pred_check_branch
      %151 = sbr.rel (0) target = $region17
    $region16: #{tpu_custom_call.1} parent=1 // pred_region
      %152 = dma.done [#allocation3], 16
    $region17: #{tpu_custom_call.1} parent=1 // pred_fallthru
      _
    %153 = vsyncpa [#allocation3], 1

</llo_original>
